<compile_context>
chip_gen: v7x
topology: tpu7x:2x2x1
jax: 0.10.0
libtpu: 0.0.40
codegen_flags: <defaults>
</compile_context>

<pallas_src>
import functools

import jax
import jax.numpy as jnp
from jax.experimental import pallas as pl
from jax.experimental.pallas import tpu as pltpu


# ----------------------------------------------------------------------------
# Device / capacity helpers (host-side, trace-time only).
# ----------------------------------------------------------------------------
def _tpu_generation_and_vmem():
    """Returns (generation:int, vmem_capacity_bytes:int) with safe fallbacks."""
    kind = ""
    try:
        kind = jax.devices()[0].device_kind.lower()
    except Exception:
        pass
    if "v7" in kind:
        gen = 7
    elif "v6" in kind:
        gen = 6
    elif "v5" in kind:
        gen = 5
    else:
        gen = 6  # sensible default
    try:
        vmem_cap = int(pltpu.get_tpu_info().vmem_capacity_bytes)
    except Exception:
        vmem_cap = (64 << 20) if gen >= 7 else (128 << 20)
    return gen, vmem_cap


def _vmem_footprint(tm, ti, ts, H, x_bytes, w_bytes, n_wbuf=2):
    """Rough per-kernel VMEM footprint for the chosen tiles."""
    return (2 * tm * H * x_bytes             # x tile (double-buffered)
            + n_wbuf * H * 2 * ti * w_bytes  # fused fc1 weight tile
            + n_wbuf * ti * H * w_bytes      # fc2 weight tile
            + 2 * tm * H * x_bytes           # out tile (double-buffered)
            + tm * H * 4                     # f32 accumulator scratch
            + 4 * tm * 2 * ts * 4)           # h/g f32 sub-tile intermediates


def pick_tiles(M, H, I, x_bytes, w_bytes):
    """Generation- and VMEM-aware (tm, ti, ts) selection."""
    gen, vmem_cap = _tpu_generation_and_vmem()
    budget = max(vmem_cap - (8 << 20), 16 << 20)

    # Sub-tile (fc1 half-width / fc2 contraction depth): fill the MXU
    # (2x256x256 on v6e/v7x, 4x128x128 on v5e). Must be 128-aligned so the
    # in-kernel h[:, :ts]/h[:, ts:] split stays on lane-tile boundaries.
    if gen >= 6 and I % 256 == 0:
        ts = 256
    elif I % 128 == 0:
        ts = 128
    else:
        ts = I  # toy / unaligned I: block equals the full extent (legal)

    # Token tile: roofline-aware target. v5e is compute-bound by ~256;
    # v6e needs ~650 flop/byte so go to 1024 when M allows; v7x 512.
    tm_target = {5: 256, 6: 1024, 7: 512}.get(gen, 512)
    tm = M if M <= tm_target else max(16, (tm_target // 16) * 16)

    # Intermediate grid tile: largest candidate (multiple of ts, divides I)
    # whose footprint fits comfortably; capped at 512 on v7x's 64 MiB part.
    cands = [c for c in (1024, 512, 256, 128) if I % c == 0 and c % ts == 0]
    if gen >= 7:
        cands = [c for c in cands if c <= 512] or cands
    if not cands:
        cands = [ts]
    ti = cands[-1]
    for c in cands:
        if _vmem_footprint(tm, c, ts, H, x_bytes, w_bytes) * 1.2 <= budget:
            ti = c
            break
    # Last resort: shrink the token tile (never below 128 when tiling).
    while (tm < M and tm > 128
           and _vmem_footprint(tm, ti, ts, H, x_bytes, w_bytes) * 1.2 > budget):
        tm = max(128, tm // 2)
    return tm, ti, ts


# ----------------------------------------------------------------------------
# Kernel
# ----------------------------------------------------------------------------
def _ffn_swiglu_kernel(x_ref, w1_ref, w2_ref, o_ref, acc_ref, *, ts):
    """One (tm, H) token tile x one ti slab of the intermediate dimension.

    x_ref  : (tm, H)
    w1_ref : (H, 2*ti)   -- packed as nk sub-blocks [w1a_k | w1b_k] of width 2*ts
    w2_ref : (ti, H)
    o_ref  : (tm, H)     -- written once, at the last reduction step
    acc_ref: (tm, H) f32 -- fc2 accumulator, persistent across the j axis
    """
    j = pl.program_id(1)

    @pl.when(j == 0)
    def _init():
        acc_ref[...] = jnp.zeros_like(acc_ref)

    ti = w2_ref.shape[0]
    nk = ti // ts
    x = x_ref[...]

    # Sub-tile the intermediate slab: unrolled chunks let the scheduler overlap
    # chunk k+1's fc1 MXU work with chunk k's SwiGLU (EUP/VPU) and fc2 dot,
    # and keep the live f32 intermediate at (tm, 2*ts) instead of (tm, 2*ti).
    for k in range(nk):
        w1k = w1_ref[:, 2 * k * ts:2 * (k + 1) * ts]      # [w1a_k | w1b_k]
        h = jnp.dot(x, w1k, preferred_element_type=jnp.float32)
        h1 = h[:, :ts]                                     # x1 sub-slab
        h2 = h[:, ts:]                                     # x2 sub-slab
        # SwiGLU: x1 * silu(x2); sigmoid -> EUP, multiplies -> VPU.
        g = h1 * (h2 * jax.nn.sigmoid(h2))
        acc_ref[...] += jnp.dot(g.astype(w2_ref.dtype),
                                w2_ref[k * ts:(k + 1) * ts, :],
                                preferred_element_type=jnp.float32)

    @pl.when(j == pl.num_programs(1) - 1)
    def _finalize():
        o_ref[...] = acc_ref[...].astype(o_ref.dtype)


# ----------------------------------------------------------------------------
# Parameter preparation (hoist out of the forward path — call once at load).
# ----------------------------------------------------------------------------
def prepare_swiglu_params(w1, w2, ts):
    """Repack PyTorch-layout weights for the kernel.

    w1: (2*I, H), w2: (H, I)  ->  w1f: (H, 2*I) packed so that each column
    sub-block k of width 2*ts is [W1[:I].T sub_k | W1[I:].T sub_k],
    and w2t: (I, H) = W2.T.
    """
    I2, H = w1.shape
    I = I2 // 2
    assert I % ts == 0
    nk = I // ts

    w1a = w1[:I, :].T          # (H, I) -> produces x1
    w1b = w1[I:, :].T          # (H, I) -> produces x2
    w1f = jnp.concatenate(
        [w1a.reshape(H, nk, 1, ts), w1b.reshape(H, nk, 1, ts)], axis=2
    ).reshape(H, 2 * I)
    w2t = w2.T                 # (I, H)
    return w1f, w2t


# ----------------------------------------------------------------------------
# Forward wrapper
# ----------------------------------------------------------------------------
@functools.partial(jax.jit, static_argnames=("tm", "ti", "ts"))
def feed_forward_swiglu(x, w1f, w2t, *, tm, ti, ts):
    """x: (..., H); w1f: (H, 2*I) (prepared); w2t: (I, H) (prepared)."""
    orig_shape = x.shape
    H = orig_shape[-1]
    I, H_w = w2t.shape
    assert H_w == H and w1f.shape == (H, 2 * I)
    assert I % ti == 0 and ti % ts == 0
    nj = I // ti

    x2d = x.reshape(-1, H)
    M = x2d.shape[0]
    Mp = pl.cdiv(M, tm) * tm
    if Mp != M:
        x2d = jnp.pad(x2d, ((0, Mp - M), (0, 0)))   # zero rows -> g=0, benign

    gen, vmem_cap = _tpu_generation_and_vmem()

    # Optional 3-deep weight buffering in the weight-streaming-bound (decode)
    # regime, only on 128 MiB parts and only when the extra buffer fits.
    n_wbuf = 2
    if (gen <= 6 and tm <= 128 and nj >= 3
            and _vmem_footprint(tm, ti, ts, H, x2d.dtype.itemsize,
                                w1f.dtype.itemsize, n_wbuf=3) * 1.2
            <= vmem_cap - (8 << 20)):
        n_wbuf = 3

    fp = _vmem_footprint(tm, ti, ts, H, x2d.dtype.itemsize,
                         w1f.dtype.itemsize, n_wbuf=n_wbuf)
    # Capacity-aware clamp: never request more than the chip physically has
    # (v7x: 64 MiB; v5e/v6e: 128 MiB).
    vmem_limit = int(min(max(int(fp * 1.25), 32 << 20), vmem_cap - (4 << 20)))

    if n_wbuf == 3:
        w1_spec = pl.BlockSpec((H, 2 * ti), lambda i, j: (0, j),
                               pipeline_mode=pl.Buffered(3))
        w2_spec = pl.BlockSpec((ti, H), lambda i, j: (j, 0),
                               pipeline_mode=pl.Buffered(3))
    else:
        w1_spec = pl.BlockSpec((H, 2 * ti), lambda i, j: (0, j))
        w2_spec = pl.BlockSpec((ti, H), lambda i, j: (j, 0))

    cost = pl.CostEstimate(
        flops=int(6 * Mp * H * I),
        transcendentals=int(Mp * I),
        bytes_accessed=int(2 * Mp * H * x2d.dtype.itemsize
                           + (Mp // tm) * 3 * I * H * w1f.dtype.itemsize),
    )

    out = pl.pallas_call(
        functools.partial(_ffn_swiglu_kernel, ts=ts),
        out_shape=jax.ShapeDtypeStruct((Mp, H), x.dtype),
        grid_spec=pltpu.PrefetchScalarGridSpec(
            num_scalar_prefetch=0,
            grid=(Mp // tm, nj),                              # reduction axis last
            in_specs=[
                pl.BlockSpec((tm, H), lambda i, j: (i, 0)),   # x tile
                w1_spec,                                      # fused fc1 tile
                w2_spec,                                      # fc2 tile
            ],
            out_specs=pl.BlockSpec((tm, H), lambda i, j: (i, 0)),
            scratch_shapes=[pltpu.VMEM((tm, H), jnp.float32)],
        ),
        compiler_params=pltpu.CompilerParams(
            dimension_semantics=("parallel", "arbitrary"),
            vmem_limit_bytes=vmem_limit,
        ),
        cost_estimate=cost,
    )(x2d, w1f, w2t)

    if Mp != M:
        out = out[:M]
    return out.reshape(orig_shape)


# ----------------------------------------------------------------------------
# Reference + test
# ----------------------------------------------------------------------------
def _reference(x, w1, w2):
    h = jnp.einsum("...h,oh->...o", x, w1)
    I = w1.shape[0] // 2
    x1, x2 = h[..., :I], h[..., I:]
    g = x1 * (x2 * jax.nn.sigmoid(x2))
    return jnp.einsum("...i,hi->...h", g, w2)


if __name__ == "__main__":
    # Small config: batch=2, seq=8, hidden=32, intermediate=64.
    B, S, H, I = 2, 8, 32, 64

    key = jax.random.PRNGKey(0)
    kx, k1, k2 = jax.random.split(key, 3)
    x = jax.random.normal(kx, (B, S, H), dtype=jnp.float32)
    # PyTorch Linear layouts: (out_features, in_features).
    w1 = jax.random.normal(k1, (2 * I, H), dtype=jnp.float32) * 0.05
    w2 = jax.random.normal(k2, (H, I), dtype=jnp.float32) * 0.05

    # Hoisted (done once per model, not per forward call).
    M = B * S
    tm, ti, ts = pick_tiles(M, H, I, x.dtype.itemsize, w1.dtype.itemsize)
    w1f, w2t = prepare_swiglu_params(w1, w2, ts)

    y = feed_forward_swiglu(x, w1f, w2t, tm=tm, ti=ti, ts=ts)
    y = jax.block_until_ready(y)

    y_ref = _reference(x, w1, w2)
    assert y.shape == (B, S, H)
    assert jnp.allclose(y, y_ref, atol=1e-4, rtol=1e-4), "mismatch vs reference"

    print("KERNEL_OK")
</pallas_src>

<mosaic_0001>
module attributes {stable_mosaic.version = 11 : i64} {
  func.func @_ffn_swiglu_kernel(%arg0: i32, %arg1: i32, %arg2: memref<16x32xf32, #tpu.memory_space<vmem>>, %arg3: memref<32x128xf32, #tpu.memory_space<vmem>>, %arg4: memref<64x32xf32, #tpu.memory_space<vmem>>, %arg5: memref<16x32xf32, #tpu.memory_space<vmem>>, %arg6: memref<16x32xf32, #tpu.memory_space<vmem>>) attributes {dimension_semantics = [#tpu.dimension_semantics<parallel>, #tpu.dimension_semantics<arbitrary>], iteration_bounds = array<i64: 1, 1>, scalar_prefetch = 0 : i64, scratch_operands = 1 : i64, tpu.core_type = #tpu.core_type<tc>, window_params = [{transform_indices = @transform_0, window_bounds = array<i64: 16, 32>}, {transform_indices = @transform_1, window_bounds = array<i64: 32, 128>}, {transform_indices = @transform_2, window_bounds = array<i64: 64, 32>}, {transform_indices = @transform_3, window_bounds = array<i64: 16, 32>}]} {
    %c0_i32 = arith.constant 0 : i32
    %0 = arith.cmpi eq, %arg1, %c0_i32 : i32
    %1 = arith.extui %0 : i1 to i32
    %c0_i32_0 = arith.constant 0 : i32
    %2 = arith.cmpi ne, %1, %c0_i32_0 : i32
    scf.if %2 {
      %cst_14 = arith.constant 0.000000e+00 : f32
      %23 = vector.broadcast %cst_14 : f32 to vector<16x32xf32>
      %c0_15 = arith.constant 0 : index
      %c0_16 = arith.constant 0 : index
      %24 = vector.load %arg6[%c0_15, %c0_16] : memref<16x32xf32, #tpu.memory_space<vmem>>, vector<16x32xf32>
      tpu.vector_store %arg6[%c0_15, %c0_16], %23 {strides = array<i32>} : memref<16x32xf32, #tpu.memory_space<vmem>>, vector<16x32xf32>,
    } else {
    }
    %c0 = arith.constant 0 : index
    %c0_1 = arith.constant 0 : index
    %3 = vector.load %arg2[%c0, %c0_1] : memref<16x32xf32, #tpu.memory_space<vmem>>, vector<16x32xf32>
    %c0_2 = arith.constant 0 : index
    %c0_3 = arith.constant 0 : index
    %4 = vector.load %arg3[%c0_2, %c0_3] : memref<32x128xf32, #tpu.memory_space<vmem>>, vector<32x128xf32>
    %cst = arith.constant dense<0.000000e+00> : vector<16x128xf32>
    %5 = tpu.matmul %3, %4, %cst {dimension_numbers = #tpu.dot_dimension_numbers<[1], [0], [0], [1], [0, 0, 1, 1], [], []>} : vector<16x32xf32>, vector<32x128xf32>, vector<16x128xf32> -> vector<16x128xf32>
    %6 = vector.extract_strided_slice %5 {offsets = [0, 0], sizes = [16, 64], strides = [1, 1]} : vector<16x128xf32> to vector<16x64xf32>
    %7 = vector.extract_strided_slice %5 {offsets = [0, 64], sizes = [16, 64], strides = [1, 1]} : vector<16x128xf32> to vector<16x64xf32>
    %8 = arith.negf %7 : vector<16x64xf32>
    %9 = math.exp %8 : vector<16x64xf32>
    %cst_4 = arith.constant 1.000000e+00 : f32
    %10 = vector.broadcast %cst_4 : f32 to vector<16x64xf32>
    %11 = arith.addf %10, %9 : vector<16x64xf32>
    %12 = arith.divf %10, %11 : vector<16x64xf32>
    %13 = arith.mulf %7, %12 : vector<16x64xf32>
    %14 = arith.mulf %6, %13 : vector<16x64xf32>
    %c0_5 = arith.constant 0 : index
    %c0_6 = arith.constant 0 : index
    %15 = vector.load %arg6[%c0_5, %c0_6] : memref<16x32xf32, #tpu.memory_space<vmem>>, vector<16x32xf32>
    %c0_7 = arith.constant 0 : index
    %c0_8 = arith.constant 0 : index
    %16 = vector.load %arg4[%c0_7, %c0_8] : memref<64x32xf32, #tpu.memory_space<vmem>>, vector<64x32xf32>
    %cst_9 = arith.constant dense<0.000000e+00> : vector<16x32xf32>
    %17 = tpu.matmul %14, %16, %cst_9 {dimension_numbers = #tpu.dot_dimension_numbers<[1], [0], [0], [1], [0, 0, 1, 1], [], []>} : vector<16x64xf32>, vector<64x32xf32>, vector<16x32xf32> -> vector<16x32xf32>
    %18 = arith.addf %15, %17 : vector<16x32xf32>
    %c0_10 = arith.constant 0 : index
    %c0_11 = arith.constant 0 : index
    %19 = vector.load %arg6[%c0_10, %c0_11] : memref<16x32xf32, #tpu.memory_space<vmem>>, vector<16x32xf32>
    tpu.vector_store %arg6[%c0_10, %c0_11], %18 {strides = array<i32>} : memref<16x32xf32, #tpu.memory_space<vmem>>, vector<16x32xf32>,
    %c0_i32_12 = arith.constant 0 : i32
    %20 = arith.cmpi eq, %arg1, %c0_i32_12 : i32
    %21 = arith.extui %20 : i1 to i32
    %c0_i32_13 = arith.constant 0 : i32
    %22 = arith.cmpi ne, %21, %c0_i32_13 : i32
    scf.if %22 {
      %c0_14 = arith.constant 0 : index
      %c0_15 = arith.constant 0 : index
      %23 = vector.load %arg6[%c0_14, %c0_15] : memref<16x32xf32, #tpu.memory_space<vmem>>, vector<16x32xf32>
      %c0_16 = arith.constant 0 : index
      %c0_17 = arith.constant 0 : index
      %24 = vector.load %arg5[%c0_16, %c0_17] : memref<16x32xf32, #tpu.memory_space<vmem>>, vector<16x32xf32>
      tpu.vector_store %arg5[%c0_16, %c0_17], %23 {strides = array<i32>} : memref<16x32xf32, #tpu.memory_space<vmem>>, vector<16x32xf32>,
    } else {
    }
    return
  }
  func.func @transform_0(%arg0: i32, %arg1: i32) -> (i32, i32) {
    %c0_i32 = arith.constant 0 : i32
    %c0_i32_0 = arith.constant 0 : i32
    return %arg0, %c0_i32 : i32, i32
  }
  func.func @transform_1(%arg0: i32, %arg1: i32) -> (i32, i32) {
    %c0_i32 = arith.constant 0 : i32
    %c0_i32_0 = arith.constant 0 : i32
    return %c0_i32, %arg1 : i32, i32
  }
  func.func @transform_2(%arg0: i32, %arg1: i32) -> (i32, i32) {
    %c0_i32 = arith.constant 0 : i32
    %c0_i32_0 = arith.constant 0 : i32
    return %arg1, %c0_i32 : i32, i32
  }
  func.func @transform_3(%arg0: i32, %arg1: i32) -> (i32, i32) {
    %c0_i32 = arith.constant 0 : i32
    %c0_i32_0 = arith.constant 0 : i32
    return %arg0, %c0_i32 : i32, i32
  }
}

</mosaic_0001>

<llo_original>
// kernel: feed_forward_swiglu.1
$region0: #{feed_forward_swiglu.1}
  #allocation0 [shape = 'u32[]', space=smem, size = 0x4, offset = 0x4, fixed_abs, tag = 'smem constant byte address 0x4 - core index']
  #allocation1 [shape = 'u32[144,128]{1,0:T(1,128)}', space=vmem, size = 0x12000, scoped, tag = 'internal scratch']
  #allocation2 [shape = 'f32[16,32]{1,0:T(8,128)}', space=vmem, size = 0x2000, scoped, tag = 'scratch operand']
  %s0 = inlined_call_operand.vmem [shape: f32[16,32], index: 0, kind: input, shape index: {}]
  %s1 = inlined_call_operand.vmem [shape: f32[32,128], index: 1, kind: input, shape index: {}]
  %s2 = inlined_call_operand.vmem [shape: f32[64,32], index: 2, kind: input, shape index: {}]
  %s3 = inlined_call_operand.hbm [shape: f32[16,32], index: 3, kind: output, shape index: {}]
  %s4 = sld [smem:[#allocation0]]
  $region30: #{feed_forward_swiglu.1} parent=0
    _
  %s6 = ssub.s32 1, %s4
  %s7 = scalar_select 0, %s6, %s4
  $region1: #{feed_forward_swiglu.1} parent=0
    #allocation3 [shape = 'u8[8192]{0}', space=vmem, size = 0x2000, scoped, tag = 'output window, operand 0, single buffered']
    #allocation4 [shape = 's32[1]{0}', space=sflag, size = 0x4, scoped, tag = 'scoped memory for feed_forward_swiglu.1']
    %8 = vsyncpa [#allocation4], 0
    // Predicated region
    $region2: #{feed_forward_swiglu.1} parent=1 // pred_check
      _
    $region3: #{feed_forward_swiglu.1} parent=1 // pred_check_branch
      %10 = sbr.rel (0) target = $region5
    $region4: #{feed_forward_swiglu.1} parent=1 // pred_region
      _
    $region5: #{feed_forward_swiglu.1} parent=1 // pred_fallthru
      _
    // Predicated region
    $region6: #{feed_forward_swiglu.1} parent=1 // pred_check
      _
    $region7: #{feed_forward_swiglu.1} parent=1 // pred_check_branch
      %12 = sbr.rel (0) target = $region9
    $region8: #{feed_forward_swiglu.1} parent=1 // pred_region
      _
    $region9: #{feed_forward_swiglu.1} parent=1 // pred_fallthru
      _
    // Predicated region
    $region10: #{feed_forward_swiglu.1} parent=1 // pred_check
      _
    $region11: #{feed_forward_swiglu.1} parent=1 // pred_check_branch
      %14 = sbr.rel (0) target = $region13
    $region12: #{feed_forward_swiglu.1} parent=1 // pred_region
      _
    $region13: #{feed_forward_swiglu.1} parent=1 // pred_fallthru
      _
    %p15 = scmp.eq.s32.totalorder 0, 0
    // Predicated region
    $region14: #{feed_forward_swiglu.1} parent=1 // pred_check
      %p16 = pneg %p15
    $region15: #{feed_forward_swiglu.1} parent=1 // pred_check_branch
      %18 = sbr.rel (%p16) target = $region17
    $region16: #{feed_forward_swiglu.1} parent=1 // pred_region
      %vm19 = vcmask 261120
      %20 = vst.msk [vmem:[#allocation2] sm:$0xff] %vm19, 0.0
      %21 = vst.msk [vmem:[#allocation2 + $0x8] sm:$0xff] %vm19, 0.0
    $region17: #{feed_forward_swiglu.1} parent=1 // pred_fallthru
      _
    %v22 = vld [vmem:[%s0] sm:$0xff]
    %v23 = vld [vmem:[%s0 + $0x8] sm:$0xff]
    %v24 = vld [vmem:[%s1] sm:$0xff]
    %v25 = vld [vmem:[%s1 + $0x8] sm:$0xff]
    %v26 = vld [vmem:[%s1 + $0x10] sm:$0xff]
    %v27 = vld [vmem:[%s1 + $0x18] sm:$0xff]
    %vm28 = vcmask 261120
    %v30 = vsel %vm28, %v22, 0
    %v33 = vsel %vm28, %v23, 0
    %35 = vmatprep.subr.mxu0 0.0
    %36 = vmatpush1.msra.mxu0 %v24
    %37 = vmatprep.subr.mxu0 0.0
    %38 = vmatpush1.msra.mxu0 %v25
    %39 = vmatprep.subr.mxu0 0.0
    %40 = vmatpush1.msra.mxu0 %v26
    %41 = vmatprep.subr.mxu0 0.0
    %42 = vmatpush1.msra.mxu0 %v27
    %43 = vmatprep.subr.mxu0 0.0
    %44 = vmatpush1.msra.mxu0 0.0
    %45 = vmatprep.subr.mxu0 0.0
    %46 = vmatpush1.msra.mxu0 0.0
    %47 = vmatprep.subr.mxu0 0.0
    %48 = vmatpush1.msra.mxu0 0.0
    %49 = vmatprep.subr.mxu0 0.0
    %50 = vmatpush1.msra.mxu0 0.0
    %51 = vmatprep.subr.mxu0 0.0
    %52 = vmatpush1.msra.mxu0 0.0
    %53 = vmatprep.subr.mxu0 0.0
    %54 = vmatpush1.msra.mxu0 0.0
    %55 = vmatprep.subr.mxu0 0.0
    %56 = vmatpush1.msra.mxu0 0.0
    %57 = vmatprep.subr.mxu0 0.0
    %58 = vmatpush1.msra.mxu0 0.0
    %59 = vmatprep.subr.mxu0 0.0
    %60 = vmatpush1.msra.mxu0 0.0
    %61 = vmatprep.subr.mxu0 0.0
    %62 = vmatpush1.msra.mxu0 0.0
    %63 = vmatprep.subr.mxu0 0.0
    %64 = vmatpush1.msra.mxu0 0.0
    %65 = vmatprep.subr.mxu0 0.0
    %66 = vmatpush1.msra.mxu0 0.0
    %67 = vmatprep.subr.mxu0 0.0
    %68 = vmatpush1.msra.mxu0 0.0
    %69 = vmatprep.subr.mxu0 0.0
    %70 = vmatpush1.msra.mxu0 0.0
    %71 = vmatprep.subr.mxu0 0.0
    %72 = vmatpush1.msra.mxu0 0.0
    %73 = vmatprep.subr.mxu0 0.0
    %74 = vmatpush1.msra.mxu0 0.0
    %75 = vmatprep.subr.mxu0 0.0
    %76 = vmatpush1.msra.mxu0 0.0
    %77 = vmatprep.subr.mxu0 0.0
    %78 = vmatpush1.msra.mxu0 0.0
    %79 = vmatprep.subr.mxu0 0.0
    %80 = vmatpush1.msra.mxu0 0.0
    %81 = vmatprep.subr.mxu0 0.0
    %82 = vmatpush1.msra.mxu0 0.0
    %83 = vmatprep.subr.mxu0 0.0
    %84 = vmatpush1.msra.mxu0 0.0
    %85 = vmatprep.subr.mxu0 0.0
    %86 = vmatpush1.msra.mxu0 0.0
    %87 = vmatprep.subr.mxu0 0.0
    %88 = vmatpush1.msra.mxu0 0.0
    %89 = vmatprep.subr.mxu0 0.0
    %90 = vmatpush1.msra.mxu0 0.0
    %91 = vmatprep.subr.mxu0 0.0
    %92 = vmatpush1.msra.mxu0 0.0
    %93 = vmatprep.subr.mxu0 0.0
    %94 = vmatpush1.msra.mxu0 0.0
    %95 = vmatprep.subr.mxu0 0.0
    %96 = vmatpush1.msra.mxu0 0.0
    %97 = vmatprep.subr.mxu0 0.0
    %98 = vmatpush1.msra.mxu0 0.0
    %99 = vmatprep.mubr.f32.mxu0 0.0
    %100 = vmatmul.mubr.f32.gmra.mrb[0].mxu0 %v30
    %v101 = vpop.f32.mrb[0].mxu0
    %v102 = vadd.f32 0.0, %v101
    %v103 = vpop.f32.mrb[0].mxu0
    %104 = vmatprep.mubr.f32.mxu0 0.0
    %105 = vmatmul.mubr.f32.gmra.mrb[0].mxu0 %v33
    %v106 = vpop.f32.mrb[0].mxu0
    %v107 = vadd.f32 0.0, %v106
    %v108 = vpop.f32.mrb[0].mxu0
    %109 = vdwg.mxu0
    %v110 = vxor.u32 %v102, 2147483648
    %v111 = vxor.u32 %v107, 2147483648
    %v112 = vmul.f32 %v110, 1.442695
    %v113 = vpow.pop %v112
    %v114 = vmul.f32 %v111, 1.442695
    %v115 = vpow.pop %v114
    %v116 = vadd.f32 %v113, 1.0
    %v117 = vadd.f32 %v115, 1.0
    %v118 = vrcp.pop %v116
    %v119 = vmul.f32 1.0, %v118
    %v120 = vrcp.pop %v117
    %v121 = vmul.f32 1.0, %v120
    %v122 = vmul.f32 %v102, %v119
    %v123 = vmul.f32 %v107, %v121
    %126 = vrot.lane.b32.xlu0 %v122, 64
    %v127 = vpop.permute.xlu0 %126
    %128 = vrot.lane.b32.xlu0 %v123, 64
    %v129 = vpop.permute.xlu0 %128
    %v132 = vmul.f32 %v102, %v127
    %v133 = vmul.f32 %v107, %v129
    %v134 = vld [vmem:[#allocation2] sm:$0xff]
    %v135 = vld [vmem:[#allocation2 + $0x8] sm:$0xff]
    %v136 = vld [vmem:[%s2] sm:$0xff]
    %v137 = vld [vmem:[%s2 + $0x8] sm:$0xff]
    %v138 = vld [vmem:[%s2 + $0x10] sm:$0xff]
    %v139 = vld [vmem:[%s2 + $0x18] sm:$0xff]
    %v140 = vld [vmem:[%s2 + $0x20] sm:$0xff]
    %v141 = vld [vmem:[%s2 + $0x28] sm:$0xff]
    %v142 = vld [vmem:[%s2 + $0x30] sm:$0xff]
    %v143 = vld [vmem:[%s2 + $0x38] sm:$0xff]
    %vm144 = vcmask 523264
    %v146 = vsel %vm144, %v132, 0
    %v149 = vsel %vm144, %v133, 0
    %151 = vmatprep.subr.mxu0 0.0
    %152 = vmatpush1.msra.mxu0 %v136
    %153 = vmatprep.subr.mxu0 0.0
    %154 = vmatpush1.msra.mxu0 %v137
    %155 = vmatprep.subr.mxu0 0.0
    %156 = vmatpush1.msra.mxu0 %v138
    %157 = vmatprep.subr.mxu0 0.0
    %158 = vmatpush1.msra.mxu0 %v139
    %159 = vmatprep.subr.mxu0 0.0
    %160 = vmatpush1.msra.mxu0 %v140
    %161 = vmatprep.subr.mxu0 0.0
    %162 = vmatpush1.msra.mxu0 %v141
    %163 = vmatprep.subr.mxu0 0.0
    %164 = vmatpush1.msra.mxu0 %v142
    %165 = vmatprep.subr.mxu0 0.0
    %166 = vmatpush1.msra.mxu0 %v143
    %167 = vmatprep.subr.mxu0 0.0
    %168 = vmatpush1.msra.mxu0 0.0
    %169 = vmatprep.subr.mxu0 0.0
    %170 = vmatpush1.msra.mxu0 0.0
    %171 = vmatprep.subr.mxu0 0.0
    %172 = vmatpush1.msra.mxu0 0.0
    %173 = vmatprep.subr.mxu0 0.0
    %174 = vmatpush1.msra.mxu0 0.0
    %175 = vmatprep.subr.mxu0 0.0
    %176 = vmatpush1.msra.mxu0 0.0
    %177 = vmatprep.subr.mxu0 0.0
    %178 = vmatpush1.msra.mxu0 0.0
    %179 = vmatprep.subr.mxu0 0.0
    %180 = vmatpush1.msra.mxu0 0.0
    %181 = vmatprep.subr.mxu0 0.0
    %182 = vmatpush1.msra.mxu0 0.0
    %183 = vmatprep.subr.mxu0 0.0
    %184 = vmatpush1.msra.mxu0 0.0
    %185 = vmatprep.subr.mxu0 0.0
    %186 = vmatpush1.msra.mxu0 0.0
    %187 = vmatprep.subr.mxu0 0.0
    %188 = vmatpush1.msra.mxu0 0.0
    %189 = vmatprep.subr.mxu0 0.0
    %190 = vmatpush1.msra.mxu0 0.0
    %191 = vmatprep.subr.mxu0 0.0
    %192 = vmatpush1.msra.mxu0 0.0
    %193 = vmatprep.subr.mxu0 0.0
    %194 = vmatpush1.msra.mxu0 0.0
    %195 = vmatprep.subr.mxu0 0.0
    %196 = vmatpush1.msra.mxu0 0.0
    %197 = vmatprep.subr.mxu0 0.0
    %198 = vmatpush1.msra.mxu0 0.0
    %199 = vmatprep.subr.mxu0 0.0
    %200 = vmatpush1.msra.mxu0 0.0
    %201 = vmatprep.subr.mxu0 0.0
    %202 = vmatpush1.msra.mxu0 0.0
    %203 = vmatprep.subr.mxu0 0.0
    %204 = vmatpush1.msra.mxu0 0.0
    %205 = vmatprep.subr.mxu0 0.0
    %206 = vmatpush1.msra.mxu0 0.0
    %207 = vmatprep.subr.mxu0 0.0
    %208 = vmatpush1.msra.mxu0 0.0
    %209 = vmatprep.subr.mxu0 0.0
    %210 = vmatpush1.msra.mxu0 0.0
    %211 = vmatprep.subr.mxu0 0.0
    %212 = vmatpush1.msra.mxu0 0.0
    %213 = vmatprep.subr.mxu0 0.0
    %214 = vmatpush1.msra.mxu0 0.0
    %215 = vmatprep.mubr.f32.mxu0 0.0
    %216 = vmatmul.mubr.f32.gmra.mrb[0].mxu0 %v146
    %v217 = vpop.f32.mrb[0].mxu0
    %v218 = vadd.f32 0.0, %v217
    %v219 = vpop.f32.mrb[0].mxu0
    %220 = vmatprep.mubr.f32.mxu0 0.0
    %221 = vmatmul.mubr.f32.gmra.mrb[0].mxu0 %v149
    %v222 = vpop.f32.mrb[0].mxu0
    %v223 = vadd.f32 0.0, %v222
    %v224 = vpop.f32.mrb[0].mxu0
    %225 = vdwg.mxu0
    %v226 = vadd.f32 %v134, %v218
    %v227 = vadd.f32 %v135, %v223
    %228 = vst.msk [vmem:[#allocation2] sm:$0xff] %vm28, %v226
    %229 = vst.msk [vmem:[#allocation2 + $0x8] sm:$0xff] %vm28, %v227
    // Predicated region
    $region18: #{feed_forward_swiglu.1} parent=1 // pred_check
      %p230 = pneg %p15
    $region19: #{feed_forward_swiglu.1} parent=1 // pred_check_branch
      %232 = sbr.rel (%p230) target = $region21
    $region20: #{feed_forward_swiglu.1} parent=1 // pred_region
      %v233 = vld [vmem:[#allocation2] sm:$0xff]
      %v234 = vld [vmem:[#allocation2 + $0x8] sm:$0xff]
      %235 = vst.msk [vmem:[#allocation3] sm:$0xff] %vm28, %v233
      %236 = vst.msk [vmem:[#allocation3 + $0x8] sm:$0xff] %vm28, %v234
    $region21: #{feed_forward_swiglu.1} parent=1 // pred_fallthru
      _
    // Predicated region
    $region22: #{feed_forward_swiglu.1} parent=1 // pred_check
      _
    $region23: #{feed_forward_swiglu.1} parent=1 // pred_check_branch
      %238 = sbr.rel (0) target = $region25
    $region24: #{feed_forward_swiglu.1} parent=1 // pred_region
      %s240 = ssub.s32 256, 256
      %241 = vsyncadd [#allocation4], %s240
      %s242 = sshll.u32 [#allocation3], 4
      %s243 = int_to_ptr.vmem [resolvable:$true] %s242
      %248 = dma.vmem_to_hbm [thread:$0]  %s243, 256, %s3, [#allocation4], 128, 128, 8
    $region25: #{feed_forward_swiglu.1} parent=1 // pred_fallthru
      _
    // Predicated region
    $region26: #{feed_forward_swiglu.1} parent=1 // pred_check
      _
    $region27: #{feed_forward_swiglu.1} parent=1 // pred_check_branch
      %250 = sbr.rel (0) target = $region29
    $region28: #{feed_forward_swiglu.1} parent=1 // pred_region
      %251 = dma.done [#allocation4], 256
    $region29: #{feed_forward_swiglu.1} parent=1 // pred_fallthru
      _
    %252 = vsyncpa [#allocation4], 1

</llo_original>
